<compile_context>
chip_gen: v6e
topology: v6e:2x2x1
jax: 0.10.0
libtpu: 0.0.40
codegen_flags: <defaults>
</compile_context>

<pallas_src>
import math
import functools

import jax
import jax.numpy as jnp
from jax import lax
from jax.experimental import pallas as pl
from jax.experimental.pallas import tpu as pltpu


def _sdpa_kernel(q_ref, k_ref, v_ref, mask_ref, ctx_ref, attn_ref, *, d_k):
    # Blocks: q (1,1,TQ,D), k/v (1,1,S,D), mask (1,1,{TQ|1},S),
    #         ctx (1,1,TQ,D), attn (1,1,TQ,S)
    # Fold 1/sqrt(d_k) into Q (scales TQ*D elements instead of TQ*S).
    scale = jnp.asarray(1.0 / math.sqrt(d_k), dtype=q_ref.dtype)
    q = q_ref[0, 0] * scale                       # (TQ, D), input dtype
    k = k_ref[0, 0]                               # (S, D),  input dtype
    v = v_ref[0, 0]                               # (S, D),  input dtype
    mask = mask_ref[0, 0]                         # (TQ|1, S) int8, nonzero = masked

    # scores = (Q/sqrt(d_k)) @ K^T : contract last dims directly (no k.T);
    # MXU accumulates in f32 without upcasting the operands.
    scores = lax.dot_general(
        q, k,
        dimension_numbers=(((1,), (1,)), ((), ())),
        preferred_element_type=jnp.float32)       # (TQ, S) f32

    # masked_fill_(attn_mask, -1e9); mask rows broadcast if its q-dim is 1.
    scores = jnp.where(mask != 0, jnp.float32(-1e9), scores)

    # Numerically stable softmax along the key axis.
    m = jnp.max(scores, axis=-1, keepdims=True)
    e = jnp.exp(scores - m)
    s = jnp.sum(e, axis=-1, keepdims=True)        # (TQ, 1), s >= 1 always
    inv = pl.reciprocal(s, approx=True)           # EUP slot (otherwise idle)
    inv = inv * (2.0 - s * inv)                   # one Newton step -> ~f32 accuracy
    attn = e * inv                                # wide path is a multiply, not a divide

    # context = attn @ V ; feed MXU operands in V's dtype, accumulate in f32.
    context = jnp.dot(attn.astype(v.dtype), v,
                      preferred_element_type=jnp.float32)    # (TQ, D)

    ctx_ref[0, 0] = context.astype(ctx_ref.dtype)
    attn_ref[0, 0] = attn.astype(attn_ref.dtype)


def _vmem_capacity_bytes():
    try:
        info = pltpu.get_tpu_info()
        cap = getattr(info, "vmem_capacity_bytes", None)
        if cap:
            return int(cap)
    except Exception:
        pass
    return 128 * 1024 * 1024  # v5e/v6e physical VMEM


def _pick_q_tile(S, D, in_bytes, attn_bytes, ctx_bytes, budget):
    """Return (TQ, S_q_padded): largest query tile whose per-step VMEM fits."""

    def footprint(tq):
        out_attn = 2 * tq * S * attn_bytes          # attn out block, double-buffered
        out_ctx = 2 * tq * D * ctx_bytes            # ctx out block
        q_blk = 2 * tq * D * in_bytes               # q in block
        kv_blk = 2 * 2 * S * D * in_bytes           # resident K and V blocks
        mask_blk = 2 * min(tq, S) * S               # int8 mask (upper bound)
        temps = 3 * tq * S * 4                      # f32 scores / e / attn temporaries
        return out_attn + out_ctx + q_blk + kv_blk + mask_blk + temps

    # Tiny sequences: one untiled block is simplest and fits trivially.
    if S <= 256 and footprint(S) <= budget:
        return S, S
    # Prefer tiles that divide S exactly (no padding).
    for t in (1024, 512, 256, 128, 64):
        if t <= S and S % t == 0 and footprint(t) <= budget:
            return t, S
    # Fall back: pad the query dim to a multiple of the largest fitting tile
    # (never reverts to the untiled O(S^2) footprint).
    for t in (512, 256, 128, 64, 32, 16, 8):
        if footprint(t) <= budget:
            return t, ((S + t - 1) // t) * t
    return 8, ((S + 7) // 8) * 8


def scaled_dot_product_attention(Q, K, V, attn_mask, *,
                                 attn_dtype=None, operand_dtype=None):
    """Q, K, V: [B, H, S, d_k]; attn_mask broadcastable to [B, H, S, S].

    attn_dtype:    dtype of the returned attention matrix (default: Q.dtype).
                   bf16 halves the dominant HBM writeback stream.
    operand_dtype: optional cast of Q/K/V before the matmuls (e.g. bf16 on
                   v5e); accumulation stays f32. Numerics knob, off by default.
    """
    B, H, S, D = Q.shape
    assert K.shape == (B, H, S, D) and V.shape == (B, H, S, D)

    out_dtype = Q.dtype
    attn_out_dtype = out_dtype if attn_dtype is None else jnp.dtype(attn_dtype)
    if operand_dtype is not None:
        Q = Q.astype(operand_dtype)
        K = K.astype(operand_dtype)
        V = V.astype(operand_dtype)

    # Normalize the mask to 4-D WITHOUT materializing the [B,H,S,S] broadcast:
    # only prepend singleton dims (exactly the numpy/torch broadcast rule);
    # batch/head/query broadcast dims are collapsed by the index_map below.
    if attn_mask.ndim < 4:
        attn_mask = attn_mask.reshape((1,) * (4 - attn_mask.ndim) + attn_mask.shape)
    Bm, Hm, Qm, Km = attn_mask.shape
    assert Bm in (1, B) and Hm in (1, H) and Qm in (1, S) and Km in (1, S)
    if Km == 1:  # key-dim broadcast: expand only this axis (other dims stay narrow)
        attn_mask = jnp.broadcast_to(attn_mask, (Bm, Hm, Qm, S))
    mask_i8 = attn_mask.astype(jnp.int8)           # 4x less HBM traffic than int32

    in_bytes = jnp.dtype(Q.dtype).itemsize
    attn_bytes = jnp.dtype(attn_out_dtype).itemsize
    ctx_bytes = jnp.dtype(out_dtype).itemsize

    # Generation-aware VMEM limit: ~75% of physical per-TC VMEM, capped at 100 MiB
    # (v7x: ~48 MiB of its 64 MiB; v5e/v6e: ~96 MiB of 128 MiB).
    vmem_limit = min(int(_vmem_capacity_bytes() * 0.75), 100 * 1024 * 1024)
    TQ, S_pad = _pick_q_tile(S, D, in_bytes, attn_bytes, ctx_bytes,
                             int(vmem_limit * 0.9))

    Qp, mask_p = Q, mask_i8
    if S_pad != S:
        Qp = jnp.pad(Q, ((0, 0), (0, 0), (0, S_pad - S), (0, 0)))
        if Qm > 1:
            mask_p = jnp.pad(mask_i8, ((0, 0), (0, 0), (0, S_pad - S), (0, 0)))
    Qm_p = S_pad if Qm > 1 else 1

    n_q = S_pad // TQ
    TQm = TQ if Qm_p > 1 else 1

    kernel = functools.partial(_sdpa_kernel, d_k=D)

    q_spec = pl.BlockSpec((1, 1, TQ, D), lambda b, h, qi: (b, h, qi, 0))
    # K/V index maps ignore qi -> blocks stay resident across the q-tile axis.
    kv_spec = pl.BlockSpec((1, 1, S, D), lambda b, h, qi: (b, h, 0, 0))
    mask_spec = pl.BlockSpec(
        (1, 1, TQm, S),
        lambda b, h, qi: (b if Bm > 1 else 0,
                          h if Hm > 1 else 0,
                          qi if Qm_p > 1 else 0,
                          0))
    ctx_spec = pl.BlockSpec((1, 1, TQ, D), lambda b, h, qi: (b, h, qi, 0))
    attn_spec = pl.BlockSpec((1, 1, TQ, S), lambda b, h, qi: (b, h, qi, 0))

    context, attn = pl.pallas_call(
        kernel,
        out_shape=(
            jax.ShapeDtypeStruct((B, H, S_pad, D), out_dtype),
            jax.ShapeDtypeStruct((B, H, S_pad, S), attn_out_dtype),
        ),
        grid_spec=pltpu.PrefetchScalarGridSpec(
            num_scalar_prefetch=0,
            grid=(B, H, n_q),
            in_specs=[q_spec, kv_spec, kv_spec, mask_spec],
            out_specs=[ctx_spec, attn_spec],
        ),
        compiler_params=pltpu.CompilerParams(
            # No cross-step accumulator -> qi is independent; lets v7x shard
            # over B*H*n_q across its two TensorCores.
            dimension_semantics=("parallel", "parallel", "parallel"),
            vmem_limit_bytes=vmem_limit,
        ),
    )(Qp, K, V, mask_p)

    if S_pad != S:
        context = context[:, :, :S, :]
        attn = attn[:, :, :S, :]
    return context, attn


def _reference(Q, K, V, attn_mask, d_k):
    scores = jnp.einsum("bhqd,bhkd->bhqk", Q, K) / jnp.sqrt(jnp.float32(d_k))
    scores = jnp.where(attn_mask, jnp.float32(-1e9), scores)
    attn = jax.nn.softmax(scores, axis=-1)
    context = jnp.einsum("bhqk,bhkd->bhqd", attn, V)
    return context, attn


if __name__ == "__main__":
    # Small BERT-like shapes: batch=2, heads=2, seq=8, d_k=32
    B, H, S, D = 2, 2, 8, 32
    key = jax.random.PRNGKey(0)
    kq, kk, kv, km = jax.random.split(key, 4)

    Q = jax.random.normal(kq, (B, H, S, D), dtype=jnp.float32)
    K = jax.random.normal(kk, (B, H, S, D), dtype=jnp.float32)
    V = jax.random.normal(kv, (B, H, S, D), dtype=jnp.float32)
    # Padding-style mask, broadcast over heads and queries: mask the last 2 keys.
    pad = jnp.arange(S) >= (S - 2)                                 # (S,)
    attn_mask = jnp.broadcast_to(pad[None, None, None, :], (B, 1, 1, S))

    context, attn = scaled_dot_product_attention(Q, K, V, attn_mask)
    jax.block_until_ready((context, attn))

    ctx_ref, attn_ref = _reference(Q, K, V, attn_mask, D)
    assert context.shape == (B, H, S, D) and attn.shape == (B, H, S, S)
    assert jnp.allclose(context, ctx_ref, atol=1e-3, rtol=1e-3)
    assert jnp.allclose(attn, attn_ref, atol=1e-3, rtol=1e-3)

    print("KERNEL_OK")
</pallas_src>

<mosaic_0001>
module attributes {stable_mosaic.version = 11 : i64} {
  func.func @_sdpa_kernel(%arg0: i32, %arg1: i32, %arg2: i32, %arg3: memref<1x1x8x32xf32, #tpu.memory_space<vmem>>, %arg4: memref<1x1x8x32xf32, #tpu.memory_space<vmem>>, %arg5: memref<1x1x8x32xf32, #tpu.memory_space<vmem>>, %arg6: memref<1x1x1x8xi8, #tpu.memory_space<vmem>>, %arg7: memref<1x1x8x32xf32, #tpu.memory_space<vmem>>, %arg8: memref<1x1x8x8xf32, #tpu.memory_space<vmem>>) attributes {dimension_semantics = [#tpu.dimension_semantics<parallel>, #tpu.dimension_semantics<parallel>, #tpu.dimension_semantics<parallel>], iteration_bounds = array<i64: 2, 2, 1>, scalar_prefetch = 0 : i64, scratch_operands = 0 : i64, tpu.core_type = #tpu.core_type<tc>, window_params = [{transform_indices = @transform_0, window_bounds = array<i64: 1, 1, 8, 32>}, {transform_indices = @transform_1, window_bounds = array<i64: 1, 1, 8, 32>}, {transform_indices = @transform_2, window_bounds = array<i64: 1, 1, 8, 32>}, {transform_indices = @transform_3, window_bounds = array<i64: 1, 1, 1, 8>}, {transform_indices = @transform_4, window_bounds = array<i64: 1, 1, 8, 32>}, {transform_indices = @transform_5, window_bounds = array<i64: 1, 1, 8, 8>}]} {
    %c0 = arith.constant 0 : index
    %c0_0 = arith.constant 0 : index
    %c0_1 = arith.constant 0 : index
    %c0_2 = arith.constant 0 : index
    %0 = vector.load %arg3[%c0, %c0_0, %c0_1, %c0_2] : memref<1x1x8x32xf32, #tpu.memory_space<vmem>>, vector<1x1x8x32xf32>
    %1 = vector.shape_cast %0 : vector<1x1x8x32xf32> to vector<8x32xf32>
    %cst = arith.constant 0.176776692 : f32
    %2 = vector.broadcast %cst : f32 to vector<8x32xf32>
    %3 = arith.mulf %1, %2 : vector<8x32xf32>
    %c0_3 = arith.constant 0 : index
    %c0_4 = arith.constant 0 : index
    %c0_5 = arith.constant 0 : index
    %c0_6 = arith.constant 0 : index
    %4 = vector.load %arg4[%c0_3, %c0_4, %c0_5, %c0_6] : memref<1x1x8x32xf32, #tpu.memory_space<vmem>>, vector<1x1x8x32xf32>
    %5 = vector.shape_cast %4 : vector<1x1x8x32xf32> to vector<8x32xf32>
    %c0_7 = arith.constant 0 : index
    %c0_8 = arith.constant 0 : index
    %c0_9 = arith.constant 0 : index
    %c0_10 = arith.constant 0 : index
    %6 = vector.load %arg5[%c0_7, %c0_8, %c0_9, %c0_10] : memref<1x1x8x32xf32, #tpu.memory_space<vmem>>, vector<1x1x8x32xf32>
    %7 = vector.shape_cast %6 : vector<1x1x8x32xf32> to vector<8x32xf32>
    %c0_11 = arith.constant 0 : index
    %c0_12 = arith.constant 0 : index
    %c0_13 = arith.constant 0 : index
    %c0_14 = arith.constant 0 : index
    %8 = vector.load %arg6[%c0_11, %c0_12, %c0_13, %c0_14] : memref<1x1x1x8xi8, #tpu.memory_space<vmem>>, vector<1x1x1x8xi8>
    %9 = vector.shape_cast %8 : vector<1x1x1x8xi8> to vector<1x8xi8>
    %cst_15 = arith.constant dense<0.000000e+00> : vector<8x8xf32>
    %10 = tpu.matmul %3, %5, %cst_15 {dimension_numbers = #tpu.dot_dimension_numbers<[1], [1], [0], [0], [0, 0, 1, 0], [], []>} : vector<8x32xf32>, vector<8x32xf32>, vector<8x8xf32> -> vector<8x8xf32>
    %c0_i8 = arith.constant 0 : i8
    %11 = vector.broadcast %c0_i8 : i8 to vector<1x8xi8>
    %12 = arith.cmpi ne, %9, %11 : vector<1x8xi8>
    %cst_16 = arith.constant -1.000000e+09 : f32
    %13 = vector.shape_cast %12 : vector<1x8xi1> to vector<1x8xi1>
    %14 = vector.broadcast %13 : vector<1x8xi1> to vector<8x8xi1>
    %15 = vector.broadcast %cst_16 : f32 to vector<8x8xf32>
    %16 = arith.select %14, %15, %10 : vector<8x8xi1>, vector<8x8xf32>
    %cst_17 = arith.constant dense<0xFF800000> : vector<8xf32>
    %17 = vector.multi_reduction <maximumf>, %16, %cst_17 [1] : vector<8x8xf32> to vector<8xf32>
    %18 = vector.shape_cast %17 : vector<8xf32> to vector<8x1xf32>
    %19 = vector.broadcast %18 : vector<8x1xf32> to vector<8x8xf32>
    %20 = arith.subf %16, %19 : vector<8x8xf32>
    %21 = math.exp %20 : vector<8x8xf32>
    %cst_18 = arith.constant dense<0.000000e+00> : vector<8xf32>
    %22 = vector.multi_reduction <add>, %21, %cst_18 [1] : vector<8x8xf32> to vector<8xf32>
    %23 = vector.shape_cast %22 : vector<8xf32> to vector<8x1xf32>
    %24 = tpu.reciprocal %23 {approx = true} : vector<8x1xf32> -> vector<8x1xf32>
    %25 = arith.mulf %23, %24 : vector<8x1xf32>
    %cst_19 = arith.constant 2.000000e+00 : f32
    %26 = vector.broadcast %cst_19 : f32 to vector<8x1xf32>
    %27 = arith.subf %26, %25 : vector<8x1xf32>
    %28 = arith.mulf %24, %27 : vector<8x1xf32>
    %29 = vector.broadcast %28 : vector<8x1xf32> to vector<8x8xf32>
    %30 = arith.mulf %21, %29 : vector<8x8xf32>
    %cst_20 = arith.constant dense<0.000000e+00> : vector<8x32xf32>
    %31 = tpu.matmul %30, %7, %cst_20 {dimension_numbers = #tpu.dot_dimension_numbers<[1], [0], [0], [1], [0, 0, 1, 1], [], []>} : vector<8x8xf32>, vector<8x32xf32>, vector<8x32xf32> -> vector<8x32xf32>
    %c0_21 = arith.constant 0 : index
    %c0_22 = arith.constant 0 : index
    %c0_23 = arith.constant 0 : index
    %c0_24 = arith.constant 0 : index
    %32 = vector.load %arg7[%c0_21, %c0_22, %c0_23, %c0_24] : memref<1x1x8x32xf32, #tpu.memory_space<vmem>>, vector<1x1x8x32xf32>
    %33 = vector.shape_cast %32 : vector<1x1x8x32xf32> to vector<8x32xf32>
    %34 = vector.shape_cast %31 : vector<8x32xf32> to vector<1x1x8x32xf32>
    tpu.vector_store %arg7[%c0_21, %c0_22, %c0_23, %c0_24], %34 {strides = array<i32>} : memref<1x1x8x32xf32, #tpu.memory_space<vmem>>, vector<1x1x8x32xf32>,
    %c0_25 = arith.constant 0 : index
    %c0_26 = arith.constant 0 : index
    %c0_27 = arith.constant 0 : index
    %c0_28 = arith.constant 0 : index
    %35 = vector.load %arg8[%c0_25, %c0_26, %c0_27, %c0_28] : memref<1x1x8x8xf32, #tpu.memory_space<vmem>>, vector<1x1x8x8xf32>
    %36 = vector.shape_cast %35 : vector<1x1x8x8xf32> to vector<8x8xf32>
    %37 = vector.shape_cast %30 : vector<8x8xf32> to vector<1x1x8x8xf32>
    tpu.vector_store %arg8[%c0_25, %c0_26, %c0_27, %c0_28], %37 {strides = array<i32>} : memref<1x1x8x8xf32, #tpu.memory_space<vmem>>, vector<1x1x8x8xf32>,
    return
  }
  func.func @transform_0(%arg0: i32, %arg1: i32, %arg2: i32) -> (i32, i32, i32, i32) {
    %c0_i32 = arith.constant 0 : i32
    %c0_i32_0 = arith.constant 0 : i32
    return %arg0, %arg1, %arg2, %c0_i32 : i32, i32, i32, i32
  }
  func.func @transform_1(%arg0: i32, %arg1: i32, %arg2: i32) -> (i32, i32, i32, i32) {
    %c0_i32 = arith.constant 0 : i32
    %c0_i32_0 = arith.constant 0 : i32
    %c0_i32_1 = arith.constant 0 : i32
    return %arg0, %arg1, %c0_i32, %c0_i32_0 : i32, i32, i32, i32
  }
  func.func @transform_2(%arg0: i32, %arg1: i32, %arg2: i32) -> (i32, i32, i32, i32) {
    %c0_i32 = arith.constant 0 : i32
    %c0_i32_0 = arith.constant 0 : i32
    %c0_i32_1 = arith.constant 0 : i32
    return %arg0, %arg1, %c0_i32, %c0_i32_0 : i32, i32, i32, i32
  }
  func.func @transform_3(%arg0: i32, %arg1: i32, %arg2: i32) -> (i32, i32, i32, i32) {
    %c0_i32 = arith.constant 0 : i32
    %c0_i32_0 = arith.constant 0 : i32
    %c0_i32_1 = arith.constant 0 : i32
    %c0_i32_2 = arith.constant 0 : i32
    return %arg0, %c0_i32, %c0_i32_0, %c0_i32_1 : i32, i32, i32, i32
  }
  func.func @transform_4(%arg0: i32, %arg1: i32, %arg2: i32) -> (i32, i32, i32, i32) {
    %c0_i32 = arith.constant 0 : i32
    %c0_i32_0 = arith.constant 0 : i32
    return %arg0, %arg1, %arg2, %c0_i32 : i32, i32, i32, i32
  }
  func.func @transform_5(%arg0: i32, %arg1: i32, %arg2: i32) -> (i32, i32, i32, i32) {
    %c0_i32 = arith.constant 0 : i32
    %c0_i32_0 = arith.constant 0 : i32
    return %arg0, %arg1, %arg2, %c0_i32 : i32, i32, i32, i32
  }
}

</mosaic_0001>

<llo_original>
// kernel: tpu_custom_call.1
$region0: #{tpu_custom_call.1}
  #allocation0 [shape = 'u32[]', space=smem, size = 0x4, offset = 0x4, fixed_abs, tag = 'smem constant byte address 0x4 - core index']
  #allocation1 [shape = 'u32[144,128]{1,0:T(1,128)}', space=vmem, size = 0x12000, scoped, tag = 'internal scratch']
  %s0 = inlined_call_operand.hbm [shape: f32[2,2,8,32], index: 0, kind: input, shape index: {}]
  %s1 = inlined_call_operand.hbm [shape: f32[2,2,8,32], index: 1, kind: input, shape index: {}]
  %s2 = inlined_call_operand.hbm [shape: f32[2,2,8,32], index: 2, kind: input, shape index: {}]
  %s3 = inlined_call_operand.vmem [shape: s8[2,1,1,8], index: 3, kind: input, shape index: {}]
  %s4 = inlined_call_operand.hbm [shape: f32[2,2,8,32], index: 4, kind: output, shape index: {0}]
  %s5 = inlined_call_operand.hbm [shape: f32[2,2,8,8], index: 5, kind: output, shape index: {1}]
  %6 = xla_tuple %s4, %s5
  %s7 = sld [smem:[#allocation0]]
  $region69: #{tpu_custom_call.1} parent=0
    _
  %s9 = ssub.s32 1, %s7
  %s10 = scalar_select 0, %s9, %s7
  $region1: #{tpu_custom_call.1} parent=0
    #allocation2 [shape = 'u8[8192]{0}', space=vmem, size = 0x2000, scoped, tag = 'input window, operand 0']
    #allocation3 [shape = 's32[2]{0}', space=sflag, size = 0x8, scoped, tag = 'scoped memory for tpu_custom_call.1']
    #allocation4 [shape = 's32[2]{0}', space=sflag, size = 0x8, scoped, tag = 'scoped memory for tpu_custom_call.1']
    #allocation5 [shape = 'u8[8192]{0}', space=vmem, size = 0x2000, scoped, tag = 'input window, operand 1']
    #allocation6 [shape = 's32[2]{0}', space=sflag, size = 0x8, scoped, tag = 'scoped memory for tpu_custom_call.1']
    #allocation7 [shape = 'u8[8192]{0}', space=vmem, size = 0x2000, scoped, tag = 'input window, operand 2']
    #allocation8 [shape = 'u8[8192]{0}', space=vmem, size = 0x2000, scoped, tag = 'output window, operand 0']
    #allocation9 [shape = 'u8[8192]{0}', space=vmem, size = 0x2000, scoped, tag = 'output window, operand 1']
    #allocation10 [shape = 's32[2]{0}', space=sflag, size = 0x8, scoped, tag = 'scoped memory for tpu_custom_call.1']
    %11 = vsyncpa [#allocation3], 0
    %s12 = scalar_lea.sflag [#allocation3], 1
    %13 = vsyncpa %s12, 0
    %14 = vsyncpa [#allocation6], 0
    %s15 = scalar_lea.sflag [#allocation6], 1
    %16 = vsyncpa %s15, 0
    %17 = vsyncpa [#allocation4], 0
    %s18 = scalar_lea.sflag [#allocation4], 1
    %19 = vsyncpa %s18, 0
    %20 = vsyncpa [#allocation10], 0
    %s21 = scalar_lea.sflag [#allocation10], 1
    %22 = vsyncpa %s21, 0
    loop: start=0, step=1, limit=6
    $region2: #{tpu_custom_call.1} parent=1 // loop_pre_header
      _
    $region3: #{tpu_custom_call.1} parent=1 // loop_header
      %s24 = sphi 0, %s28
      %p25 = scmp.ge.s32.totalorder %s24, 6
      %s31 = sphi 0, %s50
      %s32 = sphi 0, %s46
      %s33 = sphi 0, %s42
      %s34 = sphi 0, %s31
      %s35 = sphi 0, %s32
      %s36 = sphi 0, %s33
      %s37 = sphi 0, %s34
      %s38 = sphi 0, %s35
      %s39 = sphi 0, %s36
      %s57 = sphi 0, %s59
      %s60 = sphi 0, %s57
      %s61 = sphi 0, %s60
      %s77 = sphi 0, %s61
      %s85 = sphi 0, %s87
      %s88 = sphi 0, %s85
      %s89 = sphi 0, %s88
      %s105 = sphi 0, %s89
      %s113 = sphi 0, %s115
      %s116 = sphi 0, %s113
      %s117 = sphi 0, %s116
      %s133 = sphi 0, %s117
      %s139 = sphi 0, %s141
      %s142 = sphi 0, %s139
      %s143 = sphi 0, %s142
      %s159 = sphi 0, %s143
      %s169 = sphi 0, %s171
      %s172 = sphi 0, %s169
      %s173 = sphi 0, %s172
      %s189 = sphi 0, %s173
      %s199 = sphi 0, %s201
      %s202 = sphi 0, %s199
      %s203 = sphi 0, %s202
      %s219 = sphi 0, %s203
    $region4: #{tpu_custom_call.1} parent=1 // loop_header_branch
      %27 = sbr.rel (%p25) target = $region8
    $region5: #{tpu_custom_call.1} parent=1 // loop_body
      %s29 = ssub.s32 %s24, 1
      %s30 = ssub.s32 %s24, 2
      %s40 = sadd.s32 1, %s33
      %p41 = scmp.ge.s32.totalorder %s40, 1
      %s42 = scalar_select %p41, 0, %s40
      %s43 = sadd.s32 1, %s32
      %s44 = scalar_select %p41, %s43, %s32
      %p45 = scmp.ge.s32.totalorder %s44, 2
      %s46 = scalar_select %p45, 0, %s44
      %s47 = sadd.s32 1, %s31
      %s48 = scalar_select %p45, %s47, %s31
      %p49 = scmp.ge.s32.totalorder %s48, 2
      %s50 = scalar_select %p49, 0, %s48
      %s51 = ssub.s32 %s31, %s50
      %s52 = ssub.s32 %s32, %s46
      %s53 = sor.u32 %s51, %s52
      %s54 = ssub.s32 %s33, %s42
      %s55 = sor.u32 %s53, %s54
      %p56 = scmp.eq.s32.totalorder %s55, 0
      %s58 = sadd.s32 %s57, 1
      %s59 = scalar_select %p56, %s57, %s58
      %p62 = pneg %p56
      %p63 = scmp.eq.s32.totalorder %s24, 3
      %p64 = por %p62, %p63
      %p65 = scmp.ne.s32.totalorder %s57, %s60
      %p66 = scmp.eq.s32.totalorder %s24, 0
      %p67 = por %p65, %p66
      %p68 = scmp.ne.s32.totalorder %s57, %s60
      %p69 = scmp.eq.s32.totalorder %s29, 3
      %p70 = por %p68, %p69
      %p71 = scmp.ne.s32.totalorder %s60, %s61
      %p72 = scmp.eq.s32.totalorder %s29, 0
      %p73 = por %p71, %p72
      %p74 = scmp.ne.s32.totalorder %s60, %s61
      %p75 = scmp.eq.s32.totalorder %s30, 3
      %p76 = por %p74, %p75
      %p78 = scmp.ne.s32.totalorder %s61, %s77
      %p79 = scmp.eq.s32.totalorder %s30, 0
      %p80 = por %p78, %p79
      %s81 = ssub.s32 %s31, %s50
      %s82 = ssub.s32 %s32, %s46
      %s83 = sor.u32 %s81, %s82
      %p84 = scmp.eq.s32.totalorder %s83, 0
      %s86 = sadd.s32 %s85, 1
      %s87 = scalar_select %p84, %s85, %s86
      %p90 = pneg %p84
      %p91 = scmp.eq.s32.totalorder %s24, 3
      %p92 = por %p90, %p91
      %p93 = scmp.ne.s32.totalorder %s85, %s88
      %p94 = scmp.eq.s32.totalorder %s24, 0
      %p95 = por %p93, %p94
      %p96 = scmp.ne.s32.totalorder %s85, %s88
      %p97 = scmp.eq.s32.totalorder %s29, 3
      %p98 = por %p96, %p97
      %p99 = scmp.ne.s32.totalorder %s88, %s89
      %p100 = scmp.eq.s32.totalorder %s29, 0
      %p101 = por %p99, %p100
      %p102 = scmp.ne.s32.totalorder %s88, %s89
      %p103 = scmp.eq.s32.totalorder %s30, 3
      %p104 = por %p102, %p103
      %p106 = scmp.ne.s32.totalorder %s89, %s105
      %p107 = scmp.eq.s32.totalorder %s30, 0
      %p108 = por %p106, %p107
      %s109 = ssub.s32 %s31, %s50
      %s110 = ssub.s32 %s32, %s46
      %s111 = sor.u32 %s109, %s110
      %p112 = scmp.eq.s32.totalorder %s111, 0
      %s114 = sadd.s32 %s113, 1
      %s115 = scalar_select %p112, %s113, %s114
      %p118 = pneg %p112
      %p119 = scmp.eq.s32.totalorder %s24, 3
      %p120 = por %p118, %p119
      %p121 = scmp.ne.s32.totalorder %s113, %s116
      %p122 = scmp.eq.s32.totalorder %s24, 0
      %p123 = por %p121, %p122
      %p124 = scmp.ne.s32.totalorder %s113, %s116
      %p125 = scmp.eq.s32.totalorder %s29, 3
      %p126 = por %p124, %p125
      %p127 = scmp.ne.s32.totalorder %s116, %s117
      %p128 = scmp.eq.s32.totalorder %s29, 0
      %p129 = por %p127, %p128
      %p130 = scmp.ne.s32.totalorder %s116, %s117
      %p131 = scmp.eq.s32.totalorder %s30, 3
      %p132 = por %p130, %p131
      %p134 = scmp.ne.s32.totalorder %s117, %s133
      %p135 = scmp.eq.s32.totalorder %s30, 0
      %p136 = por %p134, %p135
      %s137 = ssub.s32 %s31, %s50
      %p138 = scmp.eq.s32.totalorder %s137, 0
      %s140 = sadd.s32 %s139, 1
      %s141 = scalar_select %p138, %s139, %s140
      %p144 = pneg %p138
      %p145 = scmp.eq.s32.totalorder %s24, 3
      %p146 = por %p144, %p145
      %p147 = scmp.ne.s32.totalorder %s139, %s142
      %p148 = scmp.eq.s32.totalorder %s24, 0
      %p149 = por %p147, %p148
      %p150 = scmp.ne.s32.totalorder %s139, %s142
      %p151 = scmp.eq.s32.totalorder %s29, 3
      %p152 = por %p150, %p151
      %p153 = scmp.ne.s32.totalorder %s142, %s143
      %p154 = scmp.eq.s32.totalorder %s29, 0
      %p155 = por %p153, %p154
      %p156 = scmp.ne.s32.totalorder %s142, %s143
      %p157 = scmp.eq.s32.totalorder %s30, 3
      %p158 = por %p156, %p157
      %p160 = scmp.ne.s32.totalorder %s143, %s159
      %p161 = scmp.eq.s32.totalorder %s30, 0
      %p162 = por %p160, %p161
      %s163 = ssub.s32 %s31, %s50
      %s164 = ssub.s32 %s32, %s46
      %s165 = sor.u32 %s163, %s164
      %s166 = ssub.s32 %s33, %s42
      %s167 = sor.u32 %s165, %s166
      %p168 = scmp.eq.s32.totalorder %s167, 0
      %s170 = sadd.s32 %s169, 1
      %s171 = scalar_select %p168, %s169, %s170
      %p174 = pneg %p168
      %p175 = scmp.eq.s32.totalorder %s24, 3
      %p176 = por %p174, %p175
      %p177 = scmp.ne.s32.totalorder %s169, %s172
      %p178 = scmp.eq.s32.totalorder %s24, 0
      %p179 = por %p177, %p178
      %p180 = scmp.ne.s32.totalorder %s169, %s172
      %p181 = scmp.eq.s32.totalorder %s29, 3
      %p182 = por %p180, %p181
      %p183 = scmp.ne.s32.totalorder %s172, %s173
      %p184 = scmp.eq.s32.totalorder %s29, 0
      %p185 = por %p183, %p184
      %p186 = scmp.ne.s32.totalorder %s172, %s173
      %p187 = scmp.eq.s32.totalorder %s30, 3
      %p188 = por %p186, %p187
      %p190 = scmp.ne.s32.totalorder %s173, %s189
      %p191 = scmp.eq.s32.totalorder %s30, 0
      %p192 = por %p190, %p191
      %s193 = ssub.s32 %s31, %s50
      %s194 = ssub.s32 %s32, %s46
      %s195 = sor.u32 %s193, %s194
      %s196 = ssub.s32 %s33, %s42
      %s197 = sor.u32 %s195, %s196
      %p198 = scmp.eq.s32.totalorder %s197, 0
      %s200 = sadd.s32 %s199, 1
      %s201 = scalar_select %p198, %s199, %s200
      %p204 = pneg %p198
      %p205 = scmp.eq.s32.totalorder %s24, 3
      %p206 = por %p204, %p205
      %p207 = scmp.ne.s32.totalorder %s199, %s202
      %p208 = scmp.eq.s32.totalorder %s24, 0
      %p209 = por %p207, %p208
      %p210 = scmp.ne.s32.totalorder %s199, %s202
      %p211 = scmp.eq.s32.totalorder %s29, 3
      %p212 = por %p210, %p211
      %p213 = scmp.ne.s32.totalorder %s202, %s203
      %p214 = scmp.eq.s32.totalorder %s29, 0
      %p215 = por %p213, %p214
      %p216 = scmp.ne.s32.totalorder %s202, %s203
      %p217 = scmp.eq.s32.totalorder %s30, 3
      %p218 = por %p216, %p217
      %p220 = scmp.ne.s32.totalorder %s203, %s219
      %p221 = scmp.eq.s32.totalorder %s30, 0
      %p222 = por %p220, %p221
      %p223 = scmp.le.s32.totalorder 1, %s24
      %p224 = scmp.lt.s32.totalorder %s24, 5
      %p225 = pnand %p223, %p224
      %p226 = pneg %p225
      // Predicated region
      $region9: #{tpu_custom_call.1} parent=5 // pred_check
        _
      $region10: #{tpu_custom_call.1} parent=5 // pred_check_branch
        %228 = sbr.rel (%p225) target = $region12
      $region11: #{tpu_custom_call.1} parent=5 // pred_region
        %s229 = ssub.s32 %s24, 1
      $region12: #{tpu_custom_call.1} parent=5 // pred_fallthru
        _
      %p230 = scmp.lt.s32.totalorder %s24, 4
      // Predicated region
      $region13: #{tpu_custom_call.1} parent=5 // pred_check
        %p231 = pneg %p230
      $region14: #{tpu_custom_call.1} parent=5 // pred_check_branch
        %233 = sbr.rel (%p231) target = $region16
      $region15: #{tpu_custom_call.1} parent=5 // pred_region
        // Predicated region
        $region17: #{tpu_custom_call.1} parent=15 // pred_check
          %p234 = pneg %p67
        $region18: #{tpu_custom_call.1} parent=15 // pred_check_branch
          %236 = sbr.rel (%p234) target = $region20
        $region19: #{tpu_custom_call.1} parent=15 // pred_region
          %s237 = sand.u32 %s57, 1
          %s238 = scalar_lea.sflag [#allocation3], %s237
          %s239 = sand.u32 %s57, 1
          %s240 = smul.addr %s239, 8
          %s241 = scalar_lea.vmem [#allocation2], %s240
          %s243 = ssub.s32 128, 128
          %244 = vsyncadd %s238, %s243
          %s245 = sadd.s32 %s33, %s32
          %s246 = smul.addr %s31, 2
          %s247 = sadd.s32 %s245, %s246
          %s248 = smul.addr %s247, 128
          %s249 = scalar_lea.hbm %s0, %s248
          %s251 = sshll.u32 %s241, 4
          %s252 = int_to_ptr.vmem [resolvable:$true] %s251
          %254 = dma.hbm_to_vmem [thread:$0]  %s249, 128, %s252, %s238
        $region20: #{tpu_custom_call.1} parent=15 // pred_fallthru
          _
        // Predicated region
        $region21: #{tpu_custom_call.1} parent=15 // pred_check
          %p255 = pneg %p95
        $region22: #{tpu_custom_call.1} parent=15 // pred_check_branch
          %257 = sbr.rel (%p255) target = $region24
        $region23: #{tpu_custom_call.1} parent=15 // pred_region
          %s258 = sand.u32 %s24, 1
          %s259 = scalar_lea.sflag [#allocation6], %s258
          %s260 = sand.u32 %s85, 1
          %s261 = smul.addr %s260, 8
          %s262 = scalar_lea.vmem [#allocation5], %s261
          %s264 = ssub.s32 128, 128
          %265 = vsyncadd %s259, %s264
          %s266 = smul.addr %s31, 2
          %s267 = sadd.s32 %s32, %s266
          %s268 = smul.addr %s267, 128
          %s269 = scalar_lea.hbm %s1, %s268
          %s271 = sshll.u32 %s262, 4
          %s272 = int_to_ptr.vmem [resolvable:$true] %s271
          %274 = dma.hbm_to_vmem [thread:$0]  %s269, 128, %s272, %s259
        $region24: #{tpu_custom_call.1} parent=15 // pred_fallthru
          _
        // Predicated region
        $region25: #{tpu_custom_call.1} parent=15 // pred_check
          %p275 = pneg %p123
        $region26: #{tpu_custom_call.1} parent=15 // pred_check_branch
          %277 = sbr.rel (%p275) target = $region28
        $region27: #{tpu_custom_call.1} parent=15 // pred_region
          %s278 = sand.u32 %s24, 1
          %s279 = scalar_lea.sflag [#allocation6], %s278
          %s280 = sand.u32 %s113, 1
          %s281 = smul.addr %s280, 8
          %s282 = scalar_lea.vmem [#allocation7], %s281
          %s284 = ssub.s32 128, 128
          %285 = vsyncadd %s279, %s284
          %s286 = smul.addr %s31, 2
          %s287 = sadd.s32 %s32, %s286
          %s288 = smul.addr %s287, 128
          %s289 = scalar_lea.hbm %s2, %s288
          %s291 = sshll.u32 %s282, 4
          %s292 = int_to_ptr.vmem [resolvable:$true] %s291
          %294 = dma.hbm_to_vmem [thread:$0]  %s289, 128, %s292, %s279
        $region28: #{tpu_custom_call.1} parent=15 // pred_fallthru
          _
        // Predicated region
        $region29: #{tpu_custom_call.1} parent=15 // pred_check
          %p295 = pneg %p149
        $region30: #{tpu_custom_call.1} parent=15 // pred_check_branch
          %297 = sbr.rel (%p295) target = $region32
        $region31: #{tpu_custom_call.1} parent=15 // pred_region
          %p298 = scmp.lt.s32.totalorder %s31, 1
          %s299 = scalar_select %p298, %s31, 1
          %s300 = scalar_lea.vmem %s3, %s299
        $region32: #{tpu_custom_call.1} parent=15 // pred_fallthru
          _
      $region16: #{tpu_custom_call.1} parent=5 // pred_fallthru
        _
      %p301 = scmp.le.s32.totalorder 1, %s24
      %p302 = scmp.lt.s32.totalorder %s24, 5
      %p303 = pnand %p301, %p302
      %p304 = pneg %p303
      // Predicated region
      $region33: #{tpu_custom_call.1} parent=5 // pred_check
        _
      $region34: #{tpu_custom_call.1} parent=5 // pred_check_branch
        %306 = sbr.rel (%p303) target = $region36
      $region35: #{tpu_custom_call.1} parent=5 // pred_region
        %s307 = ssub.s32 %s24, 1
        %s308 = sand.u32 %s60, 1
        %s309 = scalar_lea.sflag [#allocation3], %s308
        %s310 = sand.u32 %s60, 1
        %s311 = smul.addr %s310, 8
        %s312 = scalar_lea.vmem [#allocation2], %s311
        // Predicated region
        $region37: #{tpu_custom_call.1} parent=35 // pred_check
          %p313 = pneg %p73
        $region38: #{tpu_custom_call.1} parent=35 // pred_check_branch
          %315 = sbr.rel (%p313) target = $region40
        $region39: #{tpu_custom_call.1} parent=35 // pred_region
          %316 = dma.done %s309, 128
        $region40: #{tpu_custom_call.1} parent=35 // pred_fallthru
          _
        %s317 = sand.u32 %s29, 1
        %s318 = scalar_lea.sflag [#allocation6], %s317
        %s319 = sand.u32 %s88, 1
        %s320 = smul.addr %s319, 8
        %s321 = scalar_lea.vmem [#allocation5], %s320
        // Predicated region
        $region41: #{tpu_custom_call.1} parent=35 // pred_check
          %p322 = pneg %p101
        $region42: #{tpu_custom_call.1} parent=35 // pred_check_branch
          %324 = sbr.rel (%p322) target = $region44
        $region43: #{tpu_custom_call.1} parent=35 // pred_region
          %325 = dma.done %s318, 128
        $region44: #{tpu_custom_call.1} parent=35 // pred_fallthru
          _
        %s326 = sand.u32 %s29, 1
        %s327 = scalar_lea.sflag [#allocation6], %s326
        %s328 = sand.u32 %s116, 1
        %s329 = smul.addr %s328, 8
        %s330 = scalar_lea.vmem [#allocation7], %s329
        // Predicated region
        $region45: #{tpu_custom_call.1} parent=35 // pred_check
          %p331 = pneg %p129
        $region46: #{tpu_custom_call.1} parent=35 // pred_check_branch
          %333 = sbr.rel (%p331) target = $region48
        $region47: #{tpu_custom_call.1} parent=35 // pred_region
          %334 = dma.done %s327, 128
        $region48: #{tpu_custom_call.1} parent=35 // pred_fallthru
          _
        %s335 = sand.u32 %s60, 1
        %s336 = scalar_lea.sflag [#allocation3], %s335
        %s337 = sand.u32 %s60, 1
        %s338 = smul.addr %s337, 8
        %s339 = scalar_lea.vmem [#allocation2], %s338
        %p340 = pneg %p73
        %p341 = pneg %p70
        %s342 = sand.u32 %s29, 1
        %s343 = scalar_lea.sflag [#allocation6], %s342
        %s344 = sand.u32 %s88, 1
        %s345 = smul.addr %s344, 8
        %s346 = scalar_lea.vmem [#allocation5], %s345
        %p347 = pneg %p101
        %p348 = pneg %p98
        %s349 = sand.u32 %s29, 1
        %s350 = scalar_lea.sflag [#allocation6], %s349
        %s351 = sand.u32 %s116, 1
        %s352 = smul.addr %s351, 8
        %s353 = scalar_lea.vmem [#allocation7], %s352
        %p354 = pneg %p129
        %p355 = pneg %p126
        %p356 = scmp.lt.s32.totalorder %s34, 1
        %s357 = scalar_select %p356, %s34, 1
        %s358 = scalar_lea.vmem %s3, %s357
        %p359 = pneg %p155
        %p360 = pneg %p152
        %p361 = pneg %p185
        %p362 = pneg %p182
        %s363 = sand.u32 %s172, 1
        %s364 = scalar_lea.sflag [#allocation4], %s363
        %s365 = sand.u32 %s172, 1
        %s366 = smul.addr %s365, 8
        %s367 = scalar_lea.vmem [#allocation8], %s366
        %p368 = pneg %p215
        %p369 = pneg %p212
        %s370 = sand.u32 %s202, 1
        %s371 = scalar_lea.sflag [#allocation10], %s370
        %s372 = sand.u32 %s202, 1
        %s373 = smul.addr %s372, 8
        %s374 = scalar_lea.vmem [#allocation9], %s373
        %p375 = scmp.lt.s32.totalorder %s34, 1
        %s376 = scalar_select %p375, %s34, 1
        %s377 = scalar_lea.vmem %s3, %s376
        %v380 = vld [vmem:[%s312] sm:$0xff]
        %v381 = vmul.f32 %v380, 0.17677669
        %v382 = vld [vmem:[%s321] sm:$0xff]
        %v383 = vld [vmem:[%s330] sm:$0xff]
        %v384 = vld [vmem:[%s377] sm:$0x1]
        %vm385 = vcmask 261120
        %v387 = vsel %vm385, %v381, 0
        %v390 = vsel %vm385, %v382, 0
        %392 = vmatprep.subr.mxu0 0.0
        %393 = vmatpush1.xpose.msra.mxu0 0.0
        %394 = vmatprep.subr.mxu0 0.0
        %395 = vmatpush1.xpose.msra.mxu0 0.0
        %396 = vmatprep.subr.mxu0 0.0
        %397 = vmatpush1.xpose.msra.mxu0 0.0
        %398 = vmatprep.subr.mxu0 0.0
        %399 = vmatpush1.xpose.msra.mxu0 0.0
        %400 = vmatprep.subr.mxu0 0.0
        %401 = vmatpush1.xpose.msra.mxu0 0.0
        %402 = vmatprep.subr.mxu0 0.0
        %403 = vmatpush1.xpose.msra.mxu0 0.0
        %404 = vmatprep.subr.mxu0 0.0
        %405 = vmatpush1.xpose.msra.mxu0 0.0
        %406 = vmatprep.subr.mxu0 0.0
        %407 = vmatpush1.xpose.msra.mxu0 0.0
        %408 = vmatprep.subr.mxu0 0.0
        %409 = vmatpush1.xpose.msra.mxu0 0.0
        %410 = vmatprep.subr.mxu0 0.0
        %411 = vmatpush1.xpose.msra.mxu0 0.0
        %412 = vmatprep.subr.mxu0 0.0
        %413 = vmatpush1.xpose.msra.mxu0 0.0
        %414 = vmatprep.subr.mxu0 0.0
        %415 = vmatpush1.xpose.msra.mxu0 0.0
        %416 = vmatprep.subr.mxu0 0.0
        %417 = vmatpush1.xpose.msra.mxu0 0.0
        %418 = vmatprep.subr.mxu0 0.0
        %419 = vmatpush1.xpose.msra.mxu0 0.0
        %420 = vmatprep.subr.mxu0 0.0
        %421 = vmatpush1.xpose.msra.mxu0 0.0
        %422 = vmatprep.subr.mxu0 0.0
        %423 = vmatpush1.xpose.msra.mxu0 %v390
        %424 = vmatprep.subr.mxu0 0.0
        %425 = vmatpush2.xpose.msra.mxu0 0.0
        %426 = vmatprep.subr.mxu0 0.0
        %427 = vmatpush2.xpose.msra.mxu0 0.0
        %428 = vmatprep.subr.mxu0 0.0
        %429 = vmatpush2.xpose.msra.mxu0 0.0
        %430 = vmatprep.subr.mxu0 0.0
        %431 = vmatpush2.xpose.msra.mxu0 0.0
        %432 = vmatprep.subr.mxu0 0.0
        %433 = vmatpush2.xpose.msra.mxu0 0.0
        %434 = vmatprep.subr.mxu0 0.0
        %435 = vmatpush2.xpose.msra.mxu0 0.0
        %436 = vmatprep.subr.mxu0 0.0
        %437 = vmatpush2.xpose.msra.mxu0 0.0
        %438 = vmatprep.subr.mxu0 0.0
        %439 = vmatpush2.xpose.msra.mxu0 0.0
        %440 = vmatprep.subr.mxu0 0.0
        %441 = vmatpush2.xpose.msra.mxu0 0.0
        %442 = vmatprep.subr.mxu0 0.0
        %443 = vmatpush2.xpose.msra.mxu0 0.0
        %444 = vmatprep.subr.mxu0 0.0
        %445 = vmatpush2.xpose.msra.mxu0 0.0
        %446 = vmatprep.subr.mxu0 0.0
        %447 = vmatpush2.xpose.msra.mxu0 0.0
        %448 = vmatprep.subr.mxu0 0.0
        %449 = vmatpush2.xpose.msra.mxu0 0.0
        %450 = vmatprep.subr.mxu0 0.0
        %451 = vmatpush2.xpose.msra.mxu0 0.0
        %452 = vmatprep.subr.mxu0 0.0
        %453 = vmatpush2.xpose.msra.mxu0 0.0
        %454 = vmatprep.subr.mxu0 0.0
        %455 = vmatpush2.xpose.msra.mxu0 0.0
        %456 = vmatprep.mubr.f32.mxu0 0.0
        %457 = vmatmul.mubr.f32.gmra.mxu0 %v387
        %v458 = vpop.f32.mrf.mxu0
        %v459 = vadd.f32 0.0, %v458
        %v460 = vpop.f32.mrf.mxu0
        %461 = vdwg.mxu0
        %vm462 = vnez %v384
        %v463 = vsel %vm462, 16843009, 0
        %v464 = vunpack.c.0.s8 %v463
        %vm465 = vcmp.ne.s32.totalorder %v464, 0
        %v466 = vsel %vm465, 1, 0
        %v467 = vlaneseq
        %v468 = vshrl.u32 %v467, 7
        %v469 = vsub.s32 0, %v468
        %v470 = vrot.slane %v466, %v469
        %vm471 = vcmp.eq.s32.totalorder %v470, 1
        %v472 = vsel %vm471, -1e+09, %v459
        %vm473 = vcmask 64512
        %v474 = vsel %vm473, %v472, -inf
        %475 = vmax.xlane.f32.xlu0 %v474
        %v476 = vpop.xlane.xlu0 %475
        %v477 = vsub.f32 %v472, %v476
        %v478 = vmul.f32 %v477, 1.442695
        %v479 = vpow.pop %v478
        %v480 = vsel %vm473, %v479, 0.0
        %481 = vadd.xlane.f32.xlu0 %v480
        %v482 = vpop.xlane.xlu0 %481
        %v483 = vrcp.pop %v482
        %v484 = vmul.f32 %v482, %v483
        %v485 = vsub.f32 2.0, %v484
        %v486 = vmul.f32 %v483, %v485
        %v487 = vmul.f32 %v479, %v486
        %v489 = vsel %vm473, %v487, 0
        %491 = vmatprep.subr.mxu0 0.0
        %492 = vmatpush1.msra.mxu0 0.0
        %493 = vmatprep.subr.mxu0 0.0
        %494 = vmatpush1.msra.mxu0 0.0
        %495 = vmatprep.subr.mxu0 0.0
        %496 = vmatpush1.msra.mxu0 0.0
        %497 = vmatprep.subr.mxu0 0.0
        %498 = vmatpush1.msra.mxu0 0.0
        %499 = vmatprep.subr.mxu0 0.0
        %500 = vmatpush1.msra.mxu0 0.0
        %501 = vmatprep.subr.mxu0 0.0
        %502 = vmatpush1.msra.mxu0 0.0
        %503 = vmatprep.subr.mxu0 0.0
        %504 = vmatpush1.msra.mxu0 0.0
        %505 = vmatprep.subr.mxu0 0.0
        %506 = vmatpush1.msra.mxu0 0.0
        %507 = vmatprep.subr.mxu0 0.0
        %508 = vmatpush1.msra.mxu0 0.0
        %509 = vmatprep.subr.mxu0 0.0
        %510 = vmatpush1.msra.mxu0 0.0
        %511 = vmatprep.subr.mxu0 0.0
        %512 = vmatpush1.msra.mxu0 0.0
        %513 = vmatprep.subr.mxu0 0.0
        %514 = vmatpush1.msra.mxu0 0.0
        %515 = vmatprep.subr.mxu0 0.0
        %516 = vmatpush1.msra.mxu0 0.0
        %517 = vmatprep.subr.mxu0 0.0
        %518 = vmatpush1.msra.mxu0 0.0
        %519 = vmatprep.subr.mxu0 0.0
        %520 = vmatpush1.msra.mxu0 0.0
        %521 = vmatprep.subr.mxu0 0.0
        %522 = vmatpush1.msra.mxu0 %v383
        %523 = vmatprep.subr.mxu0 0.0
        %524 = vmatpush2.msra.mxu0 0.0
        %525 = vmatprep.subr.mxu0 0.0
        %526 = vmatpush2.msra.mxu0 0.0
        %527 = vmatprep.subr.mxu0 0.0
        %528 = vmatpush2.msra.mxu0 0.0
        %529 = vmatprep.subr.mxu0 0.0
        %530 = vmatpush2.msra.mxu0 0.0
        %531 = vmatprep.subr.mxu0 0.0
        %532 = vmatpush2.msra.mxu0 0.0
        %533 = vmatprep.subr.mxu0 0.0
        %534 = vmatpush2.msra.mxu0 0.0
        %535 = vmatprep.subr.mxu0 0.0
        %536 = vmatpush2.msra.mxu0 0.0
        %537 = vmatprep.subr.mxu0 0.0
        %538 = vmatpush2.msra.mxu0 0.0
        %539 = vmatprep.subr.mxu0 0.0
        %540 = vmatpush2.msra.mxu0 0.0
        %541 = vmatprep.subr.mxu0 0.0
        %542 = vmatpush2.msra.mxu0 0.0
        %543 = vmatprep.subr.mxu0 0.0
        %544 = vmatpush2.msra.mxu0 0.0
        %545 = vmatprep.subr.mxu0 0.0
        %546 = vmatpush2.msra.mxu0 0.0
        %547 = vmatprep.subr.mxu0 0.0
        %548 = vmatpush2.msra.mxu0 0.0
        %549 = vmatprep.subr.mxu0 0.0
        %550 = vmatpush2.msra.mxu0 0.0
        %551 = vmatprep.subr.mxu0 0.0
        %552 = vmatpush2.msra.mxu0 0.0
        %553 = vmatprep.subr.mxu0 0.0
        %554 = vmatpush2.msra.mxu0 0.0
        %555 = vmatprep.mubr.f32.mxu0 0.0
        %556 = vmatmul.mubr.f32.gmra.mxu0 %v489
        %v557 = vpop.f32.mrf.mxu0
        %v558 = vadd.f32 0.0, %v557
        %v559 = vpop.f32.mrf.mxu0
        %560 = vdwg.mxu0
        %561 = vst.msk [vmem:[%s367] sm:$0xff] %vm385, %v558
        %562 = vst.msk [vmem:[%s374] sm:$0xff] %vm473, %v487
        %s563 = sand.u32 %s172, 1
        %s564 = scalar_lea.sflag [#allocation4], %s563
        %s565 = sand.u32 %s172, 1
        %s566 = smul.addr %s565, 8
        %s567 = scalar_lea.vmem [#allocation8], %s566
        %s568 = sand.u32 %s202, 1
        %s569 = scalar_lea.sflag [#allocation10], %s568
        %s570 = sand.u32 %s202, 1
        %s571 = smul.addr %s570, 8
        %s572 = scalar_lea.vmem [#allocation9], %s571
        // Predicated region
        $region49: #{tpu_custom_call.1} parent=35 // pred_check
          %p573 = pneg %p182
        $region50: #{tpu_custom_call.1} parent=35 // pred_check_branch
          %575 = sbr.rel (%p573) target = $region52
        $region51: #{tpu_custom_call.1} parent=35 // pred_region
          %s577 = ssub.s32 128, 128
          %578 = vsyncadd %s564, %s577
          %s579 = sadd.s32 %s36, %s35
          %s580 = smul.addr %s34, 2
          %s581 = sadd.s32 %s579, %s580
          %s582 = smul.addr %s581, 128
          %s583 = scalar_lea.hbm %s4, %s582
          %s585 = sshll.u32 %s567, 4
          %s586 = int_to_ptr.vmem [resolvable:$true] %s585
          %588 = dma.vmem_to_hbm [thread:$0]  %s586, 128, %s583, %s564
        $region52: #{tpu_custom_call.1} parent=35 // pred_fallthru
          _
        // Predicated region
        $region53: #{tpu_custom_call.1} parent=35 // pred_check
          %p589 = pneg %p212
        $region54: #{tpu_custom_call.1} parent=35 // pred_check_branch
          %591 = sbr.rel (%p589) target = $region56
        $region55: #{tpu_custom_call.1} parent=35 // pred_region
          %s593 = ssub.s32 128, 128
          %594 = vsyncadd %s569, %s593
          %s595 = sadd.s32 %s36, %s35
          %s596 = smul.addr %s34, 2
          %s597 = sadd.s32 %s595, %s596
          %s598 = smul.addr %s597, 128
          %s599 = scalar_lea.hbm %s5, %s598
          %s601 = sshll.u32 %s572, 4
          %s602 = int_to_ptr.vmem [resolvable:$true] %s601
          %604 = dma.vmem_to_hbm [thread:$0]  %s602, 128, %s599, %s569
        $region56: #{tpu_custom_call.1} parent=35 // pred_fallthru
          _
      $region36: #{tpu_custom_call.1} parent=5 // pred_fallthru
        _
      %p605 = scmp.le.s32.totalorder 2, %s24
      // Predicated region
      $region57: #{tpu_custom_call.1} parent=5 // pred_check
        %p606 = pneg %p605
      $region58: #{tpu_custom_call.1} parent=5 // pred_check_branch
        %608 = sbr.rel (%p606) target = $region60
      $region59: #{tpu_custom_call.1} parent=5 // pred_region
        %s609 = ssub.s32 %s24, 2
        // Predicated region
        $region61: #{tpu_custom_call.1} parent=59 // pred_check
          %p610 = pneg %p188
        $region62: #{tpu_custom_call.1} parent=59 // pred_check_branch
          %612 = sbr.rel (%p610) target = $region64
        $region63: #{tpu_custom_call.1} parent=59 // pred_region
          %s613 = sand.u32 %s173, 1
          %s614 = scalar_lea.sflag [#allocation4], %s613
          %s615 = sand.u32 %s173, 1
          %s616 = smul.addr %s615, 8
          %s617 = scalar_lea.vmem [#allocation8], %s616
          %618 = dma.done %s614, 128
        $region64: #{tpu_custom_call.1} parent=59 // pred_fallthru
          _
        // Predicated region
        $region65: #{tpu_custom_call.1} parent=59 // pred_check
          %p619 = pneg %p218
        $region66: #{tpu_custom_call.1} parent=59 // pred_check_branch
          %621 = sbr.rel (%p619) target = $region68
        $region67: #{tpu_custom_call.1} parent=59 // pred_region
          %s622 = sand.u32 %s203, 1
          %s623 = scalar_lea.sflag [#allocation10], %s622
          %s624 = sand.u32 %s203, 1
          %s625 = smul.addr %s624, 8
          %s626 = scalar_lea.vmem [#allocation9], %s625
          %627 = dma.done %s623, 128
        $region68: #{tpu_custom_call.1} parent=59 // pred_fallthru
          _
      $region60: #{tpu_custom_call.1} parent=5 // pred_fallthru
        _
    $region6: #{tpu_custom_call.1} parent=1 // loop_footer
      %s28 = sadd.s32 1, %s24
    $region7: #{tpu_custom_call.1} parent=1 // loop_footer_branch
      %23 = sbr.rel target = $region3
    $region8: #{tpu_custom_call.1} parent=1 // loop_exit
      _
    %628 = vsyncpa [#allocation3], 1
    %s629 = scalar_lea.sflag [#allocation3], 1
    %630 = vsyncpa %s629, 1
    %631 = vsyncpa [#allocation6], 1
    %s632 = scalar_lea.sflag [#allocation6], 1
    %633 = vsyncpa %s632, 1
    %634 = vsyncpa [#allocation4], 1
    %s635 = scalar_lea.sflag [#allocation4], 1
    %636 = vsyncpa %s635, 1
    %637 = vsyncpa [#allocation10], 1
    %s638 = scalar_lea.sflag [#allocation10], 1
    %639 = vsyncpa %s638, 1

</llo_original>
